<compile_context>
chip_gen: v7x
topology: tpu7x:2x2x1
jax: 0.10.0
libtpu: 0.0.40
codegen_flags: <defaults>
</compile_context>

<pallas_src>
import jax
import jax.numpy as jnp
import numpy as np
from jax import lax
from jax.experimental import pallas as pl
from jax.experimental.pallas import tpu as pltpu

# ---- module hyperparameters (small, consistent with CNN.__init__) ----
VOCAB_SIZE   = 50
EMBED_DIM    = 32
N_FILTERS    = 16
FILTER_SIZES = (3, 4, 5)
OUTPUT_DIM   = 4
DROPOUT      = 0.5          # nn.Dropout -> identity at inference (eval mode)
BATCH        = 2
SEQ_LEN      = 16

FS_MAX = max(FILTER_SIZES)
N_CAT  = len(FILTER_SIZES) * N_FILTERS                 # 48 concatenated features
N_PAD  = 128                                           # lane-dense channel width
T_PAD  = ((SEQ_LEN - min(FILTER_SIZES) + 1 + 7) // 8) * 8   # 16 (8-aligned time tiles)
L_PAD  = T_PAD + FS_MAX - 1                            # 20 (zero-padded sequence)


def cnn_kernel(ids_ref, table_ref, convw_ref, convb_ref, mask_ref,
               fcw_ref, fcb_ref, out_ref, emb_scr):
    B   = out_ref.shape[0]
    B_L = ids_ref.shape[0]
    L   = B_L // B
    V   = table_ref.shape[0]
    E   = table_ref.shape[1]

    # ---- embedding lookup fused in-kernel: exact one-hot @ table on the MXU ----
    ids = ids_ref[...]                                              # (B*L, 1) int32
    onehot = (ids == lax.broadcasted_iota(jnp.int32, (B_L, V), 1)
              ).astype(jnp.float32)                                 # (B*L, V)
    emb = jnp.dot(onehot, table_ref[...],
                  preferred_element_type=jnp.float32)               # (B*L, E)
    emb = emb.reshape(B, L, E)

    # ---- stage embeddings into a zero-padded VMEM scratch (time axis -> L_PAD) ----
    pad_len = emb_scr.shape[1] - L
    emb_scr[:, 0:L, :] = emb
    emb_scr[:, L:, :] = jnp.zeros((B, pad_len, E), jnp.float32)

    # ---- im2col from static ref slices: (B, T_PAD, FS_MAX*E) window tensor ----
    taps = [emb_scr[:, k:k + T_PAD, :] for k in range(FS_MAX)]
    win = jnp.concatenate(taps, axis=-1)                            # (B, T_PAD, FS_MAX*E)
    win = win.reshape(B * T_PAD, FS_MAX * E)                        # (32, 160)

    # ---- all conv branches in ONE matmul (K=160, lane-dense N=128) ----
    acc = jnp.dot(win, convw_ref[...],
                  preferred_element_type=jnp.float32)               # (B*T_PAD, N_PAD)
    acc = jnp.maximum(acc + convb_ref[...], 0.0)                    # bias + ReLU
    # tile-aligned split of the row dim (T_PAD multiple of 8), then zero the
    # invalid tail time positions per branch (ReLU >= 0 so 0 never wins the max)
    acc = acc.reshape(B, T_PAD, N_PAD) * mask_ref[...]

    # ---- global max-pool over time, then fused Linear (lane-dense output) ----
    pooled = jnp.max(acc, axis=1)                                   # (B, N_PAD)
    # TODO(synk): nn.Dropout(p=0.5) is identity at inference; no RNG mask applied.
    out_ref[...] = jnp.dot(pooled, fcw_ref[...],
                           preferred_element_type=jnp.float32) + fcb_ref[...]


def init_params(key):
    keys = iter(jax.random.split(key, 2 * len(FILTER_SIZES) + 3))
    emb_table = jax.random.normal(next(keys), (VOCAB_SIZE, EMBED_DIM), jnp.float32) * 0.1
    conv_ws, conv_bs = [], []
    for fs in FILTER_SIZES:
        # PyTorch Conv1d weight layout: (out_channels=F, in_channels=E, kernel=fs)
        conv_ws.append(jax.random.normal(next(keys), (N_FILTERS, EMBED_DIM, fs), jnp.float32) * 0.1)
        conv_bs.append(jax.random.normal(next(keys), (N_FILTERS,), jnp.float32) * 0.1)
    # PyTorch Linear weight layout: (out_features, in_features)
    fc_w = jax.random.normal(next(keys), (OUTPUT_DIM, N_CAT), jnp.float32) * 0.1
    fc_b = jax.random.normal(next(keys), (OUTPUT_DIM,), jnp.float32) * 0.1
    return emb_table, conv_ws, conv_bs, fc_w, fc_b


def prepare_kernel_params(emb_table, conv_ws, conv_bs, fc_w, fc_b):
    """One-time parameter layout prep (hoisted out of the per-call forward)."""
    # Combined conv weight: rows = tap k (FS_MAX taps x E), cols = branch j * F,
    # zero-padded both across unused taps (k >= fs_j) and up to 128 lanes.
    convw = np.zeros((FS_MAX * EMBED_DIM, N_PAD), np.float32)
    convb = np.zeros((1, N_PAD), np.float32)
    mask  = np.zeros((T_PAD, N_PAD), np.float32)
    for j, fs in enumerate(FILTER_SIZES):
        w = np.asarray(conv_ws[j])                                   # (F, E, fs)
        cols = slice(j * N_FILTERS, (j + 1) * N_FILTERS)
        for k in range(fs):
            convw[k * EMBED_DIM:(k + 1) * EMBED_DIM, cols] = w[:, :, k].T
        convb[0, cols] = np.asarray(conv_bs[j])
        mask[:SEQ_LEN - fs + 1, cols] = 1.0                          # valid time positions
    # Linear, padded to a lane-dense (128, 128) weight / (1, 128) bias.
    fcw = np.zeros((N_PAD, N_PAD), np.float32)
    fcw[:N_CAT, :OUTPUT_DIM] = np.asarray(fc_w).T
    fcb = np.zeros((1, N_PAD), np.float32)
    fcb[0, :OUTPUT_DIM] = np.asarray(fc_b)
    return (jnp.asarray(emb_table, jnp.float32), jnp.asarray(convw), jnp.asarray(convb),
            jnp.asarray(mask), jnp.asarray(fcw), jnp.asarray(fcb))


@jax.jit
def cnn_forward_pallas(text, kparams):
    table, convw, convb, mask, fcw, fcb = kparams
    B, L = text.shape
    ids = text.reshape(B * L, 1).astype(jnp.int32)
    vmem = pl.BlockSpec(memory_space=pltpu.MemorySpace.VMEM)
    out = pl.pallas_call(
        cnn_kernel,
        out_shape=jax.ShapeDtypeStruct((B, N_PAD), jnp.float32),
        in_specs=[vmem] * 7,
        out_specs=vmem,
        scratch_shapes=[pltpu.VMEM((B, L_PAD, EMBED_DIM), jnp.float32)],
    )(ids, table, convw, convb, mask, fcw, fcb)
    return out[:, :OUTPUT_DIM]


def cnn_forward_reference(text, emb_table, conv_ws, conv_bs, fc_w, fc_b):
    # Pure-JAX reference mirroring the PyTorch forward (NCL conv layout).
    emb = emb_table[text].astype(jnp.float32)            # (B, L, E)
    x = jnp.transpose(emb, (0, 2, 1))                    # (B, E, L)
    pooled = []
    for w, b in zip(conv_ws, conv_bs):
        y = jax.lax.conv_general_dilated(
            x, w, window_strides=(1,), padding='VALID',
            dimension_numbers=('NCH', 'OIH', 'NCH'))     # (B, F, Lout)
        y = jax.nn.relu(y + b[None, :, None])
        pooled.append(jnp.max(y, axis=2))                # (B, F)
    cat = jnp.concatenate(pooled, axis=1)                # (B, n*F)
    return cat @ fc_w.T + fc_b                           # (B, OUT)


if __name__ == "__main__":
    key = jax.random.PRNGKey(0)
    k_param, k_text = jax.random.split(key)
    emb_table, conv_ws, conv_bs, fc_w, fc_b = init_params(k_param)
    kparams = prepare_kernel_params(emb_table, conv_ws, conv_bs, fc_w, fc_b)

    text = jax.random.randint(k_text, (BATCH, SEQ_LEN), 0, VOCAB_SIZE, dtype=jnp.int32)

    out = jax.block_until_ready(cnn_forward_pallas(text, kparams))
    ref = jax.block_until_ready(
        cnn_forward_reference(text, emb_table, conv_ws, conv_bs, fc_w, fc_b))

    assert out.shape == (BATCH, OUTPUT_DIM), out.shape
    np.testing.assert_allclose(np.asarray(out), np.asarray(ref), rtol=1e-4, atol=1e-5)

    print("KERNEL_OK")
</pallas_src>

<mosaic_0001>
module attributes {stable_mosaic.version = 11 : i64} {
  func.func @cnn_kernel(%arg0: memref<32x1xi32, #tpu.memory_space<vmem>>, %arg1: memref<50x32xf32, #tpu.memory_space<vmem>>, %arg2: memref<160x128xf32, #tpu.memory_space<vmem>>, %arg3: memref<1x128xf32, #tpu.memory_space<vmem>>, %arg4: memref<16x128xf32, #tpu.memory_space<vmem>>, %arg5: memref<128x128xf32, #tpu.memory_space<vmem>>, %arg6: memref<1x128xf32, #tpu.memory_space<vmem>>, %arg7: memref<2x128xf32, #tpu.memory_space<vmem>>, %arg8: memref<2x20x32xf32, #tpu.memory_space<vmem>>) attributes {dimension_semantics = [], scalar_prefetch = 0 : i64, scratch_operands = 1 : i64, tpu.core_type = #tpu.core_type<tc>} {
    %c0 = arith.constant 0 : index
    %c0_0 = arith.constant 0 : index
    %0 = vector.load %arg0[%c0, %c0_0] : memref<32x1xi32, #tpu.memory_space<vmem>>, vector<32x1xi32>
    %1 = tpu.iota {dimensions = array<i32: 1>} : vector<32x50xi32>
    %2 = vector.broadcast %0 : vector<32x1xi32> to vector<32x50xi32>
    %3 = arith.cmpi eq, %2, %1 : vector<32x50xi32>
    %4 = arith.extui %3 : vector<32x50xi1> to vector<32x50xi32>
    %5 = arith.sitofp %4 : vector<32x50xi32> to vector<32x50xf32>
    %c0_1 = arith.constant 0 : index
    %c0_2 = arith.constant 0 : index
    %6 = vector.load %arg1[%c0_1, %c0_2] : memref<50x32xf32, #tpu.memory_space<vmem>>, vector<50x32xf32>
    %cst = arith.constant dense<0.000000e+00> : vector<32x32xf32>
    %7 = tpu.matmul %5, %6, %cst {dimension_numbers = #tpu.dot_dimension_numbers<[1], [0], [0], [1], [0, 0, 1, 1], [], []>} : vector<32x50xf32>, vector<50x32xf32>, vector<32x32xf32> -> vector<32x32xf32>
    %8 = vector.shape_cast %7 : vector<32x32xf32> to vector<2x16x32xf32>
    %c0_3 = arith.constant 0 : index
    %c0_4 = arith.constant 0 : index
    %c0_5 = arith.constant 0 : index
    %9 = vector.load %arg8[%c0_3, %c0_4, %c0_5] : memref<2x20x32xf32, #tpu.memory_space<vmem>>, vector<2x16x32xf32>
    tpu.vector_store %arg8[%c0_3, %c0_4, %c0_5], %8 {strides = array<i32>} : memref<2x20x32xf32, #tpu.memory_space<vmem>>, vector<2x16x32xf32>,
    %cst_6 = arith.constant 0.000000e+00 : f32
    %10 = vector.broadcast %cst_6 : f32 to vector<2x4x32xf32>
    %c0_7 = arith.constant 0 : index
    %c16 = arith.constant 16 : index
    %c0_8 = arith.constant 0 : index
    %11 = vector.load %arg8[%c0_7, %c16, %c0_8] : memref<2x20x32xf32, #tpu.memory_space<vmem>>, vector<2x4x32xf32>
    tpu.vector_store %arg8[%c0_7, %c16, %c0_8], %10 {strides = array<i32>} : memref<2x20x32xf32, #tpu.memory_space<vmem>>, vector<2x4x32xf32>,
    %c0_9 = arith.constant 0 : index
    %c0_10 = arith.constant 0 : index
    %c0_11 = arith.constant 0 : index
    %12 = vector.load %arg8[%c0_9, %c0_10, %c0_11] : memref<2x20x32xf32, #tpu.memory_space<vmem>>, vector<2x16x32xf32>
    %c0_12 = arith.constant 0 : index
    %c1 = arith.constant 1 : index
    %c0_13 = arith.constant 0 : index
    %13 = vector.load %arg8[%c0_12, %c1, %c0_13] : memref<2x20x32xf32, #tpu.memory_space<vmem>>, vector<2x16x32xf32>
    %c0_14 = arith.constant 0 : index
    %c2 = arith.constant 2 : index
    %c0_15 = arith.constant 0 : index
    %14 = vector.load %arg8[%c0_14, %c2, %c0_15] : memref<2x20x32xf32, #tpu.memory_space<vmem>>, vector<2x16x32xf32>
    %c0_16 = arith.constant 0 : index
    %c3 = arith.constant 3 : index
    %c0_17 = arith.constant 0 : index
    %15 = vector.load %arg8[%c0_16, %c3, %c0_17] : memref<2x20x32xf32, #tpu.memory_space<vmem>>, vector<2x16x32xf32>
    %c0_18 = arith.constant 0 : index
    %c4 = arith.constant 4 : index
    %c0_19 = arith.constant 0 : index
    %16 = vector.load %arg8[%c0_18, %c4, %c0_19] : memref<2x20x32xf32, #tpu.memory_space<vmem>>, vector<2x16x32xf32>
    %17 = tpu.concatenate %12, %13, %14, %15, %16 in 2 : vector<2x16x32xf32>, vector<2x16x32xf32>, vector<2x16x32xf32>, vector<2x16x32xf32>, vector<2x16x32xf32> -> vector<2x16x160xf32>
    %18 = vector.shape_cast %17 : vector<2x16x160xf32> to vector<32x160xf32>
    %c0_20 = arith.constant 0 : index
    %c0_21 = arith.constant 0 : index
    %19 = vector.load %arg2[%c0_20, %c0_21] : memref<160x128xf32, #tpu.memory_space<vmem>>, vector<160x128xf32>
    %cst_22 = arith.constant dense<0.000000e+00> : vector<32x128xf32>
    %20 = tpu.matmul %18, %19, %cst_22 {dimension_numbers = #tpu.dot_dimension_numbers<[1], [0], [0], [1], [0, 0, 1, 1], [], []>} : vector<32x160xf32>, vector<160x128xf32>, vector<32x128xf32> -> vector<32x128xf32>
    %c0_23 = arith.constant 0 : index
    %c0_24 = arith.constant 0 : index
    %21 = vector.load %arg3[%c0_23, %c0_24] : memref<1x128xf32, #tpu.memory_space<vmem>>, vector<1x128xf32>
    %22 = vector.broadcast %21 : vector<1x128xf32> to vector<32x128xf32>
    %23 = arith.addf %20, %22 : vector<32x128xf32>
    %cst_25 = arith.constant 0.000000e+00 : f32
    %24 = vector.broadcast %cst_25 : f32 to vector<32x128xf32>
    %25 = arith.maximumf %23, %24 : vector<32x128xf32>
    %26 = vector.shape_cast %25 : vector<32x128xf32> to vector<2x16x128xf32>
    %c0_26 = arith.constant 0 : index
    %c0_27 = arith.constant 0 : index
    %27 = vector.load %arg4[%c0_26, %c0_27] : memref<16x128xf32, #tpu.memory_space<vmem>>, vector<16x128xf32>
    %28 = vector.shape_cast %27 : vector<16x128xf32> to vector<1x16x128xf32>
    %29 = vector.broadcast %28 : vector<1x16x128xf32> to vector<2x16x128xf32>
    %30 = arith.mulf %26, %29 : vector<2x16x128xf32>
    %cst_28 = arith.constant dense<0xFF800000> : vector<2x128xf32>
    %31 = vector.multi_reduction <maximumf>, %30, %cst_28 [1] : vector<2x16x128xf32> to vector<2x128xf32>
    %c0_29 = arith.constant 0 : index
    %c0_30 = arith.constant 0 : index
    %32 = vector.load %arg5[%c0_29, %c0_30] : memref<128x128xf32, #tpu.memory_space<vmem>>, vector<128x128xf32>
    %cst_31 = arith.constant dense<0.000000e+00> : vector<2x128xf32>
    %33 = tpu.matmul %31, %32, %cst_31 {dimension_numbers = #tpu.dot_dimension_numbers<[1], [0], [0], [1], [0, 0, 1, 1], [], []>} : vector<2x128xf32>, vector<128x128xf32>, vector<2x128xf32> -> vector<2x128xf32>
    %c0_32 = arith.constant 0 : index
    %c0_33 = arith.constant 0 : index
    %34 = vector.load %arg6[%c0_32, %c0_33] : memref<1x128xf32, #tpu.memory_space<vmem>>, vector<1x128xf32>
    %35 = vector.broadcast %34 : vector<1x128xf32> to vector<2x128xf32>
    %36 = arith.addf %33, %35 : vector<2x128xf32>
    %c0_34 = arith.constant 0 : index
    %c0_35 = arith.constant 0 : index
    %37 = vector.load %arg7[%c0_34, %c0_35] : memref<2x128xf32, #tpu.memory_space<vmem>>, vector<2x128xf32>
    tpu.vector_store %arg7[%c0_34, %c0_35], %36 {strides = array<i32>} : memref<2x128xf32, #tpu.memory_space<vmem>>, vector<2x128xf32>,
    return
  }
}

</mosaic_0001>

<llo_original>
// kernel: cnn_forward_pallas.1
$region0: #{cnn_forward_pallas.1}
  #allocation0 [shape = 'u32[]', space=smem, size = 0x4, offset = 0x4, fixed_abs, tag = 'smem constant byte address 0x4 - core index']
  #allocation1 [shape = 'u32[144,128]{1,0:T(1,128)}', space=vmem, size = 0x12000, scoped, tag = 'internal scratch']
  #allocation2 [shape = 'f32[2,20,32]{2,1,0:T(8,128)}', space=vmem, size = 0x6000, scoped, tag = 'scratch operand']
  %s0 = inlined_call_operand.vmem [shape: s32[32,1], index: 0, kind: input, shape index: {}]
  %s1 = inlined_call_operand.vmem [shape: f32[50,32], index: 1, kind: input, shape index: {}]
  %s2 = inlined_call_operand.hbm [shape: f32[160,128], index: 2, kind: input, shape index: {}]
  %s3 = inlined_call_operand.vmem [shape: f32[1,128], index: 3, kind: input, shape index: {}]
  %s4 = inlined_call_operand.hbm [shape: f32[16,128], index: 4, kind: input, shape index: {}]
  %s5 = inlined_call_operand.vmem [shape: f32[128,128], index: 5, kind: input, shape index: {}]
  %s6 = inlined_call_operand.vmem [shape: f32[1,128], index: 6, kind: input, shape index: {}]
  %s7 = inlined_call_operand.hbm [shape: f32[2,128], index: 7, kind: output, shape index: {}]
  %s8 = sld [smem:[#allocation0]]
  $region46: #{cnn_forward_pallas.1} parent=0
    _
  %s10 = ssub.s32 1, %s8
  %s11 = scalar_select 0, %s10, %s8
  $region1: #{cnn_forward_pallas.1} parent=0
    #allocation3 [shape = 'u8[81920]{0}', space=vmem, size = 0x14000, scoped, tag = 'input window, operand 2, single buffered']
    #allocation4 [shape = 's32[1]{0}', space=sflag, size = 0x4, scoped, tag = 'scoped memory for cnn_forward_pallas.1']
    #allocation5 [shape = 's32[1]{0}', space=sflag, size = 0x4, scoped, tag = 'scoped memory for cnn_forward_pallas.1']
    #allocation6 [shape = 'u8[8192]{0}', space=vmem, size = 0x2000, scoped, tag = 'input window, operand 4, single buffered']
    #allocation7 [shape = 's32[1]{0}', space=sflag, size = 0x4, scoped, tag = 'scoped memory for cnn_forward_pallas.1']
    #allocation8 [shape = 'u8[1024]{0}', space=vmem, size = 0x400, scoped, tag = 'output window, operand 0, single buffered']
    %12 = vsyncpa [#allocation4], 0
    %13 = vsyncpa [#allocation7], 0
    %14 = vsyncpa [#allocation5], 0
    // Predicated region
    $region2: #{cnn_forward_pallas.1} parent=1 // pred_check
      _
    $region3: #{cnn_forward_pallas.1} parent=1 // pred_check_branch
      %16 = sbr.rel (0) target = $region5
    $region4: #{cnn_forward_pallas.1} parent=1 // pred_region
      _
    $region5: #{cnn_forward_pallas.1} parent=1 // pred_fallthru
      _
    // Predicated region
    $region6: #{cnn_forward_pallas.1} parent=1 // pred_check
      _
    $region7: #{cnn_forward_pallas.1} parent=1 // pred_check_branch
      %18 = sbr.rel (0) target = $region9
    $region8: #{cnn_forward_pallas.1} parent=1 // pred_region
      _
    $region9: #{cnn_forward_pallas.1} parent=1 // pred_fallthru
      _
    // Predicated region
    $region10: #{cnn_forward_pallas.1} parent=1 // pred_check
      _
    $region11: #{cnn_forward_pallas.1} parent=1 // pred_check_branch
      %20 = sbr.rel (0) target = $region13
    $region12: #{cnn_forward_pallas.1} parent=1 // pred_region
      %s22 = ssub.s32 2560, 2560
      %23 = vsyncadd [#allocation4], %s22
      %s24 = sshll.u32 [#allocation3], 4
      %s25 = int_to_ptr.vmem [resolvable:$true] %s24
      %30 = dma.hbm_to_vmem [thread:$0]  %s2, 2560, %s25, [#allocation4], 128, 128, 8
    $region13: #{cnn_forward_pallas.1} parent=1 // pred_fallthru
      _
    // Predicated region
    $region14: #{cnn_forward_pallas.1} parent=1 // pred_check
      _
    $region15: #{cnn_forward_pallas.1} parent=1 // pred_check_branch
      %32 = sbr.rel (0) target = $region17
    $region16: #{cnn_forward_pallas.1} parent=1 // pred_region
      _
    $region17: #{cnn_forward_pallas.1} parent=1 // pred_fallthru
      _
    // Predicated region
    $region18: #{cnn_forward_pallas.1} parent=1 // pred_check
      _
    $region19: #{cnn_forward_pallas.1} parent=1 // pred_check_branch
      %34 = sbr.rel (0) target = $region21
    $region20: #{cnn_forward_pallas.1} parent=1 // pred_region
      %s36 = ssub.s32 256, 256
      %37 = vsyncadd [#allocation7], %s36
      %s38 = sshll.u32 [#allocation6], 4
      %s39 = int_to_ptr.vmem [resolvable:$true] %s38
      %44 = dma.hbm_to_vmem [thread:$0]  %s4, 256, %s39, [#allocation7], 128, 128, 8
    $region21: #{cnn_forward_pallas.1} parent=1 // pred_fallthru
      _
    // Predicated region
    $region22: #{cnn_forward_pallas.1} parent=1 // pred_check
      _
    $region23: #{cnn_forward_pallas.1} parent=1 // pred_check_branch
      %46 = sbr.rel (0) target = $region25
    $region24: #{cnn_forward_pallas.1} parent=1 // pred_region
      _
    $region25: #{cnn_forward_pallas.1} parent=1 // pred_fallthru
      _
    // Predicated region
    $region26: #{cnn_forward_pallas.1} parent=1 // pred_check
      _
    $region27: #{cnn_forward_pallas.1} parent=1 // pred_check_branch
      %48 = sbr.rel (0) target = $region29
    $region28: #{cnn_forward_pallas.1} parent=1 // pred_region
      _
    $region29: #{cnn_forward_pallas.1} parent=1 // pred_fallthru
      _
    // Predicated region
    $region30: #{cnn_forward_pallas.1} parent=1 // pred_check
      _
    $region31: #{cnn_forward_pallas.1} parent=1 // pred_check_branch
      %50 = sbr.rel (0) target = $region33
    $region32: #{cnn_forward_pallas.1} parent=1 // pred_region
      %51 = dma.done [#allocation4], 2560
    $region33: #{cnn_forward_pallas.1} parent=1 // pred_fallthru
      _
    // Predicated region
    $region34: #{cnn_forward_pallas.1} parent=1 // pred_check
      _
    $region35: #{cnn_forward_pallas.1} parent=1 // pred_check_branch
      %53 = sbr.rel (0) target = $region37
    $region36: #{cnn_forward_pallas.1} parent=1 // pred_region
      %54 = dma.done [#allocation7], 256
    $region37: #{cnn_forward_pallas.1} parent=1 // pred_fallthru
      _
    %v55 = vld [vmem:[%s0] sm:$0xff]
    %v56 = vld [vmem:[%s0 + $0x8] sm:$0xff]
    %v57 = vld [vmem:[%s0 + $0x10] sm:$0xff]
    %v58 = vld [vmem:[%s0 + $0x18] sm:$0xff]
    %v59 = vlaneseq
    %v60 = vand.u32 %v59, 127
    %61 = vset.pattern.permute.xlu0 0
    %62 = vperm.xlu0 %61, %v55
    %v63 = vpop.permute.xlu0 %62
    %64 = vset.pattern.permute.xlu0 0
    %65 = vperm.xlu0 %64, %v56
    %v66 = vpop.permute.xlu0 %65
    %67 = vset.pattern.permute.xlu0 0
    %68 = vperm.xlu0 %67, %v57
    %v69 = vpop.permute.xlu0 %68
    %70 = vset.pattern.permute.xlu0 0
    %71 = vperm.xlu0 %70, %v58
    %v72 = vpop.permute.xlu0 %71
    %vm73 = vcmp.eq.s32.totalorder %v63, %v60
    %vm74 = vcmp.eq.s32.totalorder %v66, %v60
    %vm75 = vcmp.eq.s32.totalorder %v69, %v60
    %vm76 = vcmp.eq.s32.totalorder %v72, %v60
    %v77 = vsel %vm73, 1, 0
    %v78 = vsel %vm74, 1, 0
    %v79 = vsel %vm75, 1, 0
    %v80 = vsel %vm76, 1, 0
    %v81 = vcvt.s32.f32 %v77
    %v82 = vcvt.s32.f32 %v78
    %v83 = vcvt.s32.f32 %v79
    %v84 = vcvt.s32.f32 %v80
    %v85 = vld [vmem:[%s1] sm:$0xff]
    %v86 = vld [vmem:[%s1 + $0x8] sm:$0xff]
    %v87 = vld [vmem:[%s1 + $0x10] sm:$0xff]
    %v88 = vld [vmem:[%s1 + $0x18] sm:$0xff]
    %v89 = vld [vmem:[%s1 + $0x20] sm:$0xff]
    %v90 = vld [vmem:[%s1 + $0x28] sm:$0xff]
    %v91 = vld [vmem:[%s1 + $0x30] sm:$0x3]
    %vm92 = vcmask 408576
    %v94 = vsel %vm92, %v81, 0
    %v97 = vsel %vm92, %v82, 0
    %v100 = vsel %vm92, %v83, 0
    %v103 = vsel %vm92, %v84, 0
    %vm105 = vcmask 1041408
    %v107 = vsel %vm105, %v91, 0
    %109 = vmatprep.subr.mxu0 0.0
    %110 = vmatpush1.msra.mxu0 %v85
    %111 = vmatprep.subr.mxu0 0.0
    %112 = vmatpush1.msra.mxu0 %v86
    %113 = vmatprep.subr.mxu0 0.0
    %114 = vmatpush1.msra.mxu0 %v87
    %115 = vmatprep.subr.mxu0 0.0
    %116 = vmatpush1.msra.mxu0 %v88
    %117 = vmatprep.subr.mxu0 0.0
    %118 = vmatpush1.msra.mxu0 %v89
    %119 = vmatprep.subr.mxu0 0.0
    %120 = vmatpush1.msra.mxu0 %v90
    %121 = vmatprep.subr.mxu0 0.0
    %122 = vmatpush1.msra.mxu0 %v107
    %123 = vmatprep.subr.mxu0 0.0
    %124 = vmatpush1.msra.mxu0 0.0
    %125 = vmatprep.subr.mxu0 0.0
    %126 = vmatpush1.msra.mxu0 0.0
    %127 = vmatprep.subr.mxu0 0.0
    %128 = vmatpush1.msra.mxu0 0.0
    %129 = vmatprep.subr.mxu0 0.0
    %130 = vmatpush1.msra.mxu0 0.0
    %131 = vmatprep.subr.mxu0 0.0
    %132 = vmatpush1.msra.mxu0 0.0
    %133 = vmatprep.subr.mxu0 0.0
    %134 = vmatpush1.msra.mxu0 0.0
    %135 = vmatprep.subr.mxu0 0.0
    %136 = vmatpush1.msra.mxu0 0.0
    %137 = vmatprep.subr.mxu0 0.0
    %138 = vmatpush1.msra.mxu0 0.0
    %139 = vmatprep.subr.mxu0 0.0
    %140 = vmatpush1.msra.mxu0 0.0
    %141 = vmatprep.subr.mxu0 0.0
    %142 = vmatpush1.msra.mxu0 0.0
    %143 = vmatprep.subr.mxu0 0.0
    %144 = vmatpush1.msra.mxu0 0.0
    %145 = vmatprep.subr.mxu0 0.0
    %146 = vmatpush1.msra.mxu0 0.0
    %147 = vmatprep.subr.mxu0 0.0
    %148 = vmatpush1.msra.mxu0 0.0
    %149 = vmatprep.subr.mxu0 0.0
    %150 = vmatpush1.msra.mxu0 0.0
    %151 = vmatprep.subr.mxu0 0.0
    %152 = vmatpush1.msra.mxu0 0.0
    %153 = vmatprep.subr.mxu0 0.0
    %154 = vmatpush1.msra.mxu0 0.0
    %155 = vmatprep.subr.mxu0 0.0
    %156 = vmatpush1.msra.mxu0 0.0
    %157 = vmatprep.subr.mxu0 0.0
    %158 = vmatpush1.msra.mxu0 0.0
    %159 = vmatprep.subr.mxu0 0.0
    %160 = vmatpush1.msra.mxu0 0.0
    %161 = vmatprep.subr.mxu0 0.0
    %162 = vmatpush1.msra.mxu0 0.0
    %163 = vmatprep.subr.mxu0 0.0
    %164 = vmatpush1.msra.mxu0 0.0
    %165 = vmatprep.subr.mxu0 0.0
    %166 = vmatpush1.msra.mxu0 0.0
    %167 = vmatprep.subr.mxu0 0.0
    %168 = vmatpush1.msra.mxu0 0.0
    %169 = vmatprep.subr.mxu0 0.0
    %170 = vmatpush1.msra.mxu0 0.0
    %171 = vmatprep.subr.mxu0 0.0
    %172 = vmatpush1.msra.mxu0 0.0
    %173 = vmatprep.mubr.f32.mxu0 0.0
    %174 = vmatmul.mubr.f32.gmra.mrb[0].mxu0 %v94
    %v175 = vpop.f32.mrb[0].mxu0
    %v176 = vadd.f32 0.0, %v175
    %v177 = vpop.f32.mrb[0].mxu0
    %178 = vmatprep.mubr.f32.mxu0 0.0
    %179 = vmatmul.mubr.f32.gmra.mrb[0].mxu0 %v97
    %v180 = vpop.f32.mrb[0].mxu0
    %v181 = vadd.f32 0.0, %v180
    %v182 = vpop.f32.mrb[0].mxu0
    %183 = vmatprep.mubr.f32.mxu0 0.0
    %184 = vmatmul.mubr.f32.gmra.mrb[0].mxu0 %v100
    %v185 = vpop.f32.mrb[0].mxu0
    %v186 = vadd.f32 0.0, %v185
    %v187 = vpop.f32.mrb[0].mxu0
    %188 = vmatprep.mubr.f32.mxu0 0.0
    %189 = vmatmul.mubr.f32.gmra.mrb[0].mxu0 %v103
    %v190 = vpop.f32.mrb[0].mxu0
    %v191 = vadd.f32 0.0, %v190
    %v192 = vpop.f32.mrb[0].mxu0
    %193 = vdwg.mxu0
    %vm194 = vcmask 261120
    %195 = vst.msk [vmem:[#allocation2] sm:$0xff] %vm194, %v176
    %196 = vst.msk [vmem:[#allocation2 + $0x8] sm:$0xff] %vm194, %v181
    %197 = vst.msk [vmem:[#allocation2 + $0x18] sm:$0xff] %vm194, %v186
    %198 = vst.msk [vmem:[#allocation2 + $0x20] sm:$0xff] %vm194, %v191
    %vm199 = vcmask 257024
    %200 = vst.msk [vmem:[#allocation2 + $0x10] sm:$0xf] %vm199, 0.0
    %201 = vst.msk [vmem:[#allocation2 + $0x28] sm:$0xf] %vm199, 0.0
    %v202 = vld [vmem:[#allocation2] sm:$0xff]
    %v203 = vld [vmem:[#allocation2 + $0x8] sm:$0xff]
    %v204 = vld [vmem:[#allocation2 + $0x18] sm:$0xff]
    %v205 = vld [vmem:[#allocation2 + $0x20] sm:$0xff]
    %v206 = vld [vmem:[#allocation2 + $0x1] sm:$0xff]
    %v207 = vld [vmem:[#allocation2 + $0x9] sm:$0xff]
    %v208 = vld [vmem:[#allocation2 + $0x19] sm:$0xff]
    %v209 = vld [vmem:[#allocation2 + $0x21] sm:$0xff]
    %v210 = vld [vmem:[#allocation2 + $0x2] sm:$0xff]
    %v211 = vld [vmem:[#allocation2 + $0xa] sm:$0xff]
    %v212 = vld [vmem:[#allocation2 + $0x1a] sm:$0xff]
    %v213 = vld [vmem:[#allocation2 + $0x22] sm:$0xff]
    %v214 = vld [vmem:[#allocation2 + $0x3] sm:$0xff]
    %v215 = vld [vmem:[#allocation2 + $0xb] sm:$0xff]
    %v216 = vld [vmem:[#allocation2 + $0x1b] sm:$0xff]
    %v217 = vld [vmem:[#allocation2 + $0x23] sm:$0xff]
    %v218 = vld [vmem:[#allocation2 + $0x4] sm:$0xff]
    %v219 = vld [vmem:[#allocation2 + $0xc] sm:$0xff]
    %v220 = vld [vmem:[#allocation2 + $0x1c] sm:$0xff]
    %v221 = vld [vmem:[#allocation2 + $0x24] sm:$0xff]
    %226 = vrot.lane.b32.xlu0 %v206, 32
    %v227 = vpop.permute.xlu0 %226
    %228 = vrot.lane.b32.xlu0 %v207, 32
    %v229 = vpop.permute.xlu0 %228
    %230 = vrot.lane.b32.xlu0 %v208, 32
    %v231 = vpop.permute.xlu0 %230
    %232 = vrot.lane.b32.xlu0 %v209, 32
    %v233 = vpop.permute.xlu0 %232
    %242 = vrot.lane.b32.xlu0 %v210, 64
    %v243 = vpop.permute.xlu0 %242
    %244 = vrot.lane.b32.xlu0 %v211, 64
    %v245 = vpop.permute.xlu0 %244
    %246 = vrot.lane.b32.xlu0 %v212, 64
    %v247 = vpop.permute.xlu0 %246
    %248 = vrot.lane.b32.xlu0 %v213, 64
    %v249 = vpop.permute.xlu0 %248
    %258 = vrot.lane.b32.xlu0 %v214, 96
    %v259 = vpop.permute.xlu0 %258
    %260 = vrot.lane.b32.xlu0 %v215, 96
    %v261 = vpop.permute.xlu0 %260
    %262 = vrot.lane.b32.xlu0 %v216, 96
    %v263 = vpop.permute.xlu0 %262
    %264 = vrot.lane.b32.xlu0 %v217, 96
    %v265 = vpop.permute.xlu0 %264
    %v270 = vsel %vm194, %v202, %v227
    %v271 = vsel %vm194, %v203, %v229
    %v272 = vsel %vm194, %v204, %v231
    %v273 = vsel %vm194, %v205, %v233
    %vm274 = vcmask 523264
    %v275 = vsel %vm274, %v270, %v243
    %v276 = vsel %vm274, %v271, %v245
    %v277 = vsel %vm274, %v272, %v247
    %v278 = vsel %vm274, %v273, %v249
    %vm279 = vcmask 785408
    %v280 = vsel %vm279, %v275, %v259
    %v281 = vsel %vm279, %v276, %v261
    %v282 = vsel %vm279, %v277, %v263
    %v283 = vsel %vm279, %v278, %v265
    %v284 = vld [vmem:[#allocation3] sm:$0xff]
    %v285 = vld [vmem:[#allocation3 + $0x8] sm:$0xff]
    %v286 = vld [vmem:[#allocation3 + $0x10] sm:$0xff]
    %v287 = vld [vmem:[#allocation3 + $0x18] sm:$0xff]
    %v288 = vld [vmem:[#allocation3 + $0x20] sm:$0xff]
    %v289 = vld [vmem:[#allocation3 + $0x28] sm:$0xff]
    %v290 = vld [vmem:[#allocation3 + $0x30] sm:$0xff]
    %v291 = vld [vmem:[#allocation3 + $0x38] sm:$0xff]
    %v292 = vld [vmem:[#allocation3 + $0x40] sm:$0xff]
    %v293 = vld [vmem:[#allocation3 + $0x48] sm:$0xff]
    %v294 = vld [vmem:[#allocation3 + $0x50] sm:$0xff]
    %v295 = vld [vmem:[#allocation3 + $0x58] sm:$0xff]
    %v296 = vld [vmem:[#allocation3 + $0x60] sm:$0xff]
    %v297 = vld [vmem:[#allocation3 + $0x68] sm:$0xff]
    %v298 = vld [vmem:[#allocation3 + $0x70] sm:$0xff]
    %v299 = vld [vmem:[#allocation3 + $0x78] sm:$0xff]
    %v300 = vld [vmem:[#allocation3 + $0x80] sm:$0xff]
    %v301 = vld [vmem:[#allocation3 + $0x88] sm:$0xff]
    %v302 = vld [vmem:[#allocation3 + $0x90] sm:$0xff]
    %v303 = vld [vmem:[#allocation3 + $0x98] sm:$0xff]
    %v304 = vld [vmem:[%s3] sm:$0x1]
    %v306 = vlaneseq
    %v307 = vshrl.u32 %v306, 7
    %v308 = vsub.s32 0, %v307
    %v309 = vrot.slane %v304, %v308
    %v312 = vsel %vm194, %v218, 0
    %v315 = vsel %vm194, %v219, 0
    %v318 = vsel %vm194, %v220, 0
    %v321 = vsel %vm194, %v221, 0
    %323 = vmatprep.subr.mxu0 0.0
    %324 = vmatpush1.msra.mxu0 %v284
    %325 = vmatprep.subr.mxu0 0.0
    %326 = vmatpush1.msra.mxu0 %v285
    %327 = vmatprep.subr.mxu0 0.0
    %328 = vmatpush1.msra.mxu0 %v286
    %329 = vmatprep.subr.mxu0 0.0
    %330 = vmatpush1.msra.mxu0 %v287
    %331 = vmatprep.subr.mxu0 0.0
    %332 = vmatpush1.msra.mxu0 %v288
    %333 = vmatprep.subr.mxu0 0.0
    %334 = vmatpush1.msra.mxu0 %v289
    %335 = vmatprep.subr.mxu0 0.0
    %336 = vmatpush1.msra.mxu0 %v290
    %337 = vmatprep.subr.mxu0 0.0
    %338 = vmatpush1.msra.mxu0 %v291
    %339 = vmatprep.subr.mxu0 0.0
    %340 = vmatpush1.msra.mxu0 %v292
    %341 = vmatprep.subr.mxu0 0.0
    %342 = vmatpush1.msra.mxu0 %v293
    %343 = vmatprep.subr.mxu0 0.0
    %344 = vmatpush1.msra.mxu0 %v294
    %345 = vmatprep.subr.mxu0 0.0
    %346 = vmatpush1.msra.mxu0 %v295
    %347 = vmatprep.subr.mxu0 0.0
    %348 = vmatpush1.msra.mxu0 %v296
    %349 = vmatprep.subr.mxu0 0.0
    %350 = vmatpush1.msra.mxu0 %v297
    %351 = vmatprep.subr.mxu0 0.0
    %352 = vmatpush1.msra.mxu0 %v298
    %353 = vmatprep.subr.mxu0 0.0
    %354 = vmatpush1.msra.mxu0 %v299
    %355 = vmatprep.subr.mxu0 0.0
    %356 = vmatpush1.msra.mxu0 %v300
    %357 = vmatprep.subr.mxu0 0.0
    %358 = vmatpush1.msra.mxu0 %v301
    %359 = vmatprep.subr.mxu0 0.0
    %360 = vmatpush1.msra.mxu0 %v302
    %361 = vmatprep.subr.mxu0 0.0
    %362 = vmatpush1.msra.mxu0 %v303
    %363 = vmatprep.subr.mxu0 0.0
    %364 = vmatpush1.msra.mxu0 0.0
    %365 = vmatprep.subr.mxu0 0.0
    %366 = vmatpush1.msra.mxu0 0.0
    %367 = vmatprep.subr.mxu0 0.0
    %368 = vmatpush1.msra.mxu0 0.0
    %369 = vmatprep.subr.mxu0 0.0
    %370 = vmatpush1.msra.mxu0 0.0
    %371 = vmatprep.subr.mxu0 0.0
    %372 = vmatpush1.msra.mxu0 0.0
    %373 = vmatprep.subr.mxu0 0.0
    %374 = vmatpush1.msra.mxu0 0.0
    %375 = vmatprep.subr.mxu0 0.0
    %376 = vmatpush1.msra.mxu0 0.0
    %377 = vmatprep.subr.mxu0 0.0
    %378 = vmatpush1.msra.mxu0 0.0
    %379 = vmatprep.subr.mxu0 0.0
    %380 = vmatpush1.msra.mxu0 0.0
    %381 = vmatprep.subr.mxu0 0.0
    %382 = vmatpush1.msra.mxu0 0.0
    %383 = vmatprep.subr.mxu0 0.0
    %384 = vmatpush1.msra.mxu0 0.0
    %385 = vmatprep.subr.mxu0 0.0
    %386 = vmatpush1.msra.mxu0 0.0
    %387 = vmatprep.mubr.f32.mxu0 %v312
    %388 = vmatmul.mubr.f32.gmra.mrb[0].mxu0 %v280
    %v389 = vpop.f32.mrb[0].mxu0
    %v390 = vadd.f32 %v309, %v389
    %v391 = vpop.f32.mrb[0].mxu0
    %392 = vmatprep.mubr.f32.mxu0 %v315
    %393 = vmatmul.mubr.f32.gmra.mrb[0].mxu0 %v281
    %v394 = vpop.f32.mrb[0].mxu0
    %v395 = vadd.f32 %v309, %v394
    %v396 = vpop.f32.mrb[0].mxu0
    %397 = vmatprep.mubr.f32.mxu0 %v318
    %398 = vmatmul.mubr.f32.gmra.mrb[0].mxu0 %v282
    %v399 = vpop.f32.mrb[0].mxu0
    %v400 = vadd.f32 %v309, %v399
    %v401 = vpop.f32.mrb[0].mxu0
    %402 = vmatprep.mubr.f32.mxu0 %v321
    %403 = vmatmul.mubr.f32.gmra.mrb[0].mxu0 %v283
    %v404 = vpop.f32.mrb[0].mxu0
    %v405 = vadd.f32 %v309, %v404
    %v406 = vpop.f32.mrb[0].mxu0
    %407 = vdwg.mxu0
    %v408 = vmax.f32 %v390, 0.0
    %v409 = vmax.f32 %v395, 0.0
    %v410 = vmax.f32 %v400, 0.0
    %v411 = vmax.f32 %v405, 0.0
    %v412 = vld [vmem:[#allocation6] sm:$0xff]
    %v413 = vld [vmem:[#allocation6 + $0x8] sm:$0xff]
    %v414 = vmul.f32 %v408, %v412
    %v415 = vmul.f32 %v409, %v413
    %v416 = vmul.f32 %v410, %v412
    %v417 = vmul.f32 %v411, %v413
    %v418 = vmax.f32 %v414, %v415
    %v419 = vrot.slane %v418, 4
    %v420 = vmax.f32 %v418, %v419
    %v421 = vrot.slane %v420, 2
    %v422 = vmax.f32 %v420, %v421
    %v423 = vrot.slane %v422, 1
    %v424 = vmax.f32 %v422, %v423
    %v425 = vmax.f32 %v416, %v417
    %v426 = vrot.slane %v425, 4
    %v427 = vmax.f32 %v425, %v426
    %v428 = vrot.slane %v427, 2
    %v429 = vmax.f32 %v427, %v428
    %v430 = vrot.slane %v429, 1
    %v431 = vmax.f32 %v429, %v430
    %v432 = vld [vmem:[%s5] sm:$0xff]
    %v433 = vld [vmem:[%s5 + $0x8] sm:$0xff]
    %v434 = vld [vmem:[%s5 + $0x10] sm:$0xff]
    %v435 = vld [vmem:[%s5 + $0x18] sm:$0xff]
    %v436 = vld [vmem:[%s5 + $0x20] sm:$0xff]
    %v437 = vld [vmem:[%s5 + $0x28] sm:$0xff]
    %v438 = vld [vmem:[%s5 + $0x30] sm:$0xff]
    %v439 = vld [vmem:[%s5 + $0x38] sm:$0xff]
    %v440 = vld [vmem:[%s5 + $0x40] sm:$0xff]
    %v441 = vld [vmem:[%s5 + $0x48] sm:$0xff]
    %v442 = vld [vmem:[%s5 + $0x50] sm:$0xff]
    %v443 = vld [vmem:[%s5 + $0x58] sm:$0xff]
    %v444 = vld [vmem:[%s5 + $0x60] sm:$0xff]
    %v445 = vld [vmem:[%s5 + $0x68] sm:$0xff]
    %v446 = vld [vmem:[%s5 + $0x70] sm:$0xff]
    %v447 = vld [vmem:[%s5 + $0x78] sm:$0xff]
    %v448 = vld [vmem:[%s6] sm:$0x1]
    %v450 = vlaneseq
    %v451 = vshrl.u32 %v450, 7
    %v452 = vsub.s32 0, %v451
    %v453 = vrot.slane %v448, %v452
    %vm457 = vcmask 1041409
    %v458 = vsel %vm457, %v431, %v424
    %460 = vmatprep.subr.mxu0 0.0
    %461 = vmatpush1.msra.mxu0 %v432
    %462 = vmatprep.subr.mxu0 0.0
    %463 = vmatpush1.msra.mxu0 %v433
    %464 = vmatprep.subr.mxu0 0.0
    %465 = vmatpush1.msra.mxu0 %v434
    %466 = vmatprep.subr.mxu0 0.0
    %467 = vmatpush1.msra.mxu0 %v435
    %468 = vmatprep.subr.mxu0 0.0
    %469 = vmatpush1.msra.mxu0 %v436
    %470 = vmatprep.subr.mxu0 0.0
    %471 = vmatpush1.msra.mxu0 %v437
    %472 = vmatprep.subr.mxu0 0.0
    %473 = vmatpush1.msra.mxu0 %v438
    %474 = vmatprep.subr.mxu0 0.0
    %475 = vmatpush1.msra.mxu0 %v439
    %476 = vmatprep.subr.mxu0 0.0
    %477 = vmatpush1.msra.mxu0 %v440
    %478 = vmatprep.subr.mxu0 0.0
    %479 = vmatpush1.msra.mxu0 %v441
    %480 = vmatprep.subr.mxu0 0.0
    %481 = vmatpush1.msra.mxu0 %v442
    %482 = vmatprep.subr.mxu0 0.0
    %483 = vmatpush1.msra.mxu0 %v443
    %484 = vmatprep.subr.mxu0 0.0
    %485 = vmatpush1.msra.mxu0 %v444
    %486 = vmatprep.subr.mxu0 0.0
    %487 = vmatpush1.msra.mxu0 %v445
    %488 = vmatprep.subr.mxu0 0.0
    %489 = vmatpush1.msra.mxu0 %v446
    %490 = vmatprep.subr.mxu0 0.0
    %491 = vmatpush1.msra.mxu0 %v447
    %492 = vmatprep.subr.mxu0 0.0
    %493 = vmatpush1.msra.mxu0 0.0
    %494 = vmatprep.subr.mxu0 0.0
    %495 = vmatpush1.msra.mxu0 0.0
    %496 = vmatprep.subr.mxu0 0.0
    %497 = vmatpush1.msra.mxu0 0.0
    %498 = vmatprep.subr.mxu0 0.0
    %499 = vmatpush1.msra.mxu0 0.0
    %500 = vmatprep.subr.mxu0 0.0
    %501 = vmatpush1.msra.mxu0 0.0
    %502 = vmatprep.subr.mxu0 0.0
    %503 = vmatpush1.msra.mxu0 0.0
    %504 = vmatprep.subr.mxu0 0.0
    %505 = vmatpush1.msra.mxu0 0.0
    %506 = vmatprep.subr.mxu0 0.0
    %507 = vmatpush1.msra.mxu0 0.0
    %508 = vmatprep.subr.mxu0 0.0
    %509 = vmatpush1.msra.mxu0 0.0
    %510 = vmatprep.subr.mxu0 0.0
    %511 = vmatpush1.msra.mxu0 0.0
    %512 = vmatprep.subr.mxu0 0.0
    %513 = vmatpush1.msra.mxu0 0.0
    %514 = vmatprep.subr.mxu0 0.0
    %515 = vmatpush1.msra.mxu0 0.0
    %516 = vmatprep.subr.mxu0 0.0
    %517 = vmatpush1.msra.mxu0 0.0
    %518 = vmatprep.subr.mxu0 0.0
    %519 = vmatpush1.msra.mxu0 0.0
    %520 = vmatprep.subr.mxu0 0.0
    %521 = vmatpush1.msra.mxu0 0.0
    %522 = vmatprep.subr.mxu0 0.0
    %523 = vmatpush1.msra.mxu0 0.0
    %524 = vmatprep.mubr.f32.mxu0 0.0
    %525 = vmatmul.mubr.f32.gmra.mrb[0].mxu0 %v458
    %v526 = vpop.f32.mrb[0].mxu0
    %v527 = vadd.f32 %v453, %v526
    %v528 = vpop.f32.mrb[0].mxu0
    %529 = vdwg.mxu0
    %530 = vst [vmem:[#allocation8] sm:$0x3] %v527
    // Predicated region
    $region38: #{cnn_forward_pallas.1} parent=1 // pred_check
      _
    $region39: #{cnn_forward_pallas.1} parent=1 // pred_check_branch
      %532 = sbr.rel (0) target = $region41
    $region40: #{cnn_forward_pallas.1} parent=1 // pred_region
      %s534 = ssub.s32 32, 32
      %535 = vsyncadd [#allocation5], %s534
      %s537 = sshll.u32 [#allocation8], 4
      %s538 = int_to_ptr.vmem [resolvable:$true] %s537
      %540 = dma.vmem_to_hbm [thread:$0]  %s538, 32, %s7, [#allocation5]
    $region41: #{cnn_forward_pallas.1} parent=1 // pred_fallthru
      _
    // Predicated region
    $region42: #{cnn_forward_pallas.1} parent=1 // pred_check
      _
    $region43: #{cnn_forward_pallas.1} parent=1 // pred_check_branch
      %542 = sbr.rel (0) target = $region45
    $region44: #{cnn_forward_pallas.1} parent=1 // pred_region
      %543 = dma.done [#allocation5], 32
    $region45: #{cnn_forward_pallas.1} parent=1 // pred_fallthru
      _
    %544 = vsyncpa [#allocation4], 1
    %545 = vsyncpa [#allocation7], 1
    %546 = vsyncpa [#allocation5], 1

</llo_original>
